<compile_context>
chip_gen: v7x
topology: tpu7x:2x2x1
jax: 0.10.0
libtpu: 0.0.40
codegen_flags: <defaults>
</compile_context>

<pallas_src>
import jax
import jax.numpy as jnp
from jax.experimental import pallas as pl
from jax.experimental.pallas import tpu as pltpu

EPS = 1e-5


def _round_up(x, m):
    return (x + m - 1) // m * m


# --------------------------------------------------------------------------
# Kernel 1 (grid over relation index k):
#   acc += (rel[:, k] * bn0(e1)) @ W[k]      (MXU matmul, f32 accumulate)
#   y    = bn1(acc)                          (stored as bf16 at the last step)
# --------------------------------------------------------------------------
def tucker_y_kernel(e1_ref, relk_ref, s0_ref, t0_ref, s1_ref, t1_ref, wk_ref,
                    y_ref, acc_ref):
    k = pl.program_id(0)

    @pl.when(k == 0)
    def _():
        acc_ref[...] = jnp.zeros_like(acc_ref)

    # bn0 (eval, folded) + input_dropout (identity at inference).
    # Tiny (B_p, de_p) VPU work; recomputed per step rather than held live.
    x = e1_ref[...] * s0_ref[...] + t0_ref[...]               # (B_p, de_p)
    xk = x * relk_ref[...]                                    # rows * rel[:, k]

    # hidden_dropout on W_mat is identity at inference.
    acc_ref[...] += jnp.dot(xk, wk_ref[...],
                            preferred_element_type=jnp.float32)

    @pl.when(k == pl.num_programs(0) - 1)
    def _():
        # bn1 (eval, folded) + hidden_dropout (identity); emit bf16 so the
        # scoring kernel streams bf16 operands.
        y_ref[...] = (acc_ref[...] * s1_ref[...] + t1_ref[...]
                      ).astype(y_ref.dtype)


# --------------------------------------------------------------------------
# Kernel 2 (grid over entity tiles): scores tile = y @ ent_t[:, tile]
#   bf16 operands, f32 accumulation, lane-dense (B_p, TN) stores.
# --------------------------------------------------------------------------
def tucker_score_kernel(y_ref, ent_t_ref, out_ref):
    out_ref[...] = jnp.dot(y_ref[...], ent_t_ref[...],
                           preferred_element_type=jnp.float32
                           ).astype(out_ref.dtype)


# --------------------------------------------------------------------------
# One-time preprocessing of the static model weights (hoisted off hot path).
# --------------------------------------------------------------------------
def prepare_tucker_params(W, all_ent_emb, bn0_params, bn1_params,
                          *, tile_n=2048):
    f32 = jnp.float32
    dr, de, _ = W.shape
    N = all_ent_emb.shape[0]

    de_p = _round_up(de, 128)
    TN = tile_n if N >= tile_n else _round_up(N, 128)
    N_p = _round_up(N, TN)

    # Fold BatchNorm (eval) into per-channel scale/shift; zero in pad lanes so
    # padded columns stay exactly 0 through both kernels.
    def fold(params):
        g, b, m, v = (p.astype(f32) for p in params)
        s = g * jax.lax.rsqrt(v + EPS)
        t = b - m * s
        s_p = jnp.zeros((1, de_p), f32).at[0, :de].set(s)
        t_p = jnp.zeros((1, de_p), f32).at[0, :de].set(t)
        return s_p, t_p

    s0, t0 = fold(bn0_params)
    s1, t1 = fold(bn1_params)

    # Core tensor, zero-padded once (streamed per-k by kernel 1).
    W_p = jnp.zeros((dr, de_p, de_p), f32).at[:, :de, :de].set(W.astype(f32))

    # Entity table pre-transposed so N is the lane dimension, cast to bf16
    # once (dominant HBM stream of the scoring kernel).
    ent_t = (jnp.zeros((de_p, N_p), f32)
             .at[:de, :N].set(all_ent_emb.astype(f32).T)
             .astype(jnp.bfloat16))

    return dict(W_p=W_p, ent_t=ent_t, s0=s0, t0=t0, s1=s1, t1=t1,
                de=de, dr=dr, N=N, de_p=de_p, N_p=N_p, TN=TN)


# --------------------------------------------------------------------------
# Per-call forward: only e1/rel are padded per call (tiny).
# --------------------------------------------------------------------------
def tucker_forward(e1_emb, rel_emb, params):
    f32 = jnp.float32
    de, dr, N = params["de"], params["dr"], params["N"]
    de_p, N_p, TN = params["de_p"], params["N_p"], params["TN"]

    B = e1_emb.shape[0]
    B_p = _round_up(B, 8)

    e1_p = jnp.zeros((B_p, de_p), f32).at[:B, :de].set(e1_emb.astype(f32))
    rel_p = jnp.zeros((B_p, dr), f32).at[:B, :].set(rel_emb.astype(f32))
    # rel as (dr, B_p, 1): per-k column block, avoids dynamic lane slicing.
    rel_cols = rel_p.T.reshape(dr, B_p, 1)

    # ---- kernel 1: grid over the relation axis (reduction, "arbitrary") ----
    y = pl.pallas_call(
        tucker_y_kernel,
        out_shape=jax.ShapeDtypeStruct((B_p, de_p), jnp.bfloat16),
        grid_spec=pltpu.PrefetchScalarGridSpec(
            num_scalar_prefetch=0,
            grid=(dr,),
            in_specs=[
                pl.BlockSpec((B_p, de_p), lambda k: (0, 0)),              # e1
                pl.BlockSpec((pl.Squeezed(), B_p, 1), lambda k: (k, 0, 0)),  # rel[:,k]
                pl.BlockSpec((1, de_p), lambda k: (0, 0)),                # s0
                pl.BlockSpec((1, de_p), lambda k: (0, 0)),                # t0
                pl.BlockSpec((1, de_p), lambda k: (0, 0)),                # s1
                pl.BlockSpec((1, de_p), lambda k: (0, 0)),                # t1
                pl.BlockSpec((pl.Squeezed(), de_p, de_p),
                             lambda k: (k, 0, 0)),                        # W[k]
            ],
            out_specs=pl.BlockSpec((B_p, de_p), lambda k: (0, 0)),
            scratch_shapes=[pltpu.VMEM((B_p, de_p), jnp.float32)]),
        compiler_params=pltpu.CompilerParams(
            dimension_semantics=("arbitrary",)),
    )(e1_p, rel_cols, params["s0"], params["t0"], params["s1"], params["t1"],
      params["W_p"])

    # ---- kernel 2: scoring, tiled over the entity dimension ----
    scores = pl.pallas_call(
        tucker_score_kernel,
        out_shape=jax.ShapeDtypeStruct((B_p, N_p), f32),
        grid_spec=pltpu.PrefetchScalarGridSpec(
            num_scalar_prefetch=0,
            grid=(N_p // TN,),
            in_specs=[pl.BlockSpec((B_p, de_p), lambda j: (0, 0)),   # resident
                      pl.BlockSpec((de_p, TN), lambda j: (0, j))],   # streamed bf16
            out_specs=pl.BlockSpec((B_p, TN), lambda j: (0, j))),
        compiler_params=pltpu.CompilerParams(
            dimension_semantics=("parallel",)),          # megacore split on v7x
    )(y, params["ent_t"])

    return scores[:B, :N]


# --------------------------------------------------------------------------
# Plain-JAX reference mirroring the PyTorch forward (eval mode, f32).
# --------------------------------------------------------------------------
def tucker_reference(e1_emb, rel_emb, all_ent_emb, W, bn0_params, bn1_params):
    B, de = e1_emb.shape
    dr = rel_emb.shape[1]
    g0, b0, m0, v0 = bn0_params
    g1, b1, m1, v1 = bn1_params
    x = (e1_emb - m0) / jnp.sqrt(v0 + EPS) * g0 + b0
    w_mat = (rel_emb @ W.reshape(dr, de * de)).reshape(B, de, de)
    x = jnp.einsum('bi,bij->bj', x, w_mat)
    x = (x - m1) / jnp.sqrt(v1 + EPS) * g1 + b1
    return x @ all_ent_emb.T


if __name__ == "__main__":
    key = jax.random.PRNGKey(0)
    B, de, dr, N = 8, 32, 16, 64

    keys = jax.random.split(key, 8)
    e1 = jax.random.normal(keys[0], (B, de), jnp.float32)
    rel = jax.random.normal(keys[1], (B, dr), jnp.float32)
    all_ent = jax.random.normal(keys[2], (N, de), jnp.float32)
    # Core tensor W ~ Uniform(-1, 1), shape (dr, de, de) as in the module.
    W = jax.random.uniform(keys[3], (dr, de, de), jnp.float32, -1.0, 1.0)

    # BatchNorm params: (gamma, beta, running_mean, running_var)
    bn0 = (jnp.ones((de,), jnp.float32), jnp.zeros((de,), jnp.float32),
           0.1 * jax.random.normal(keys[4], (de,), jnp.float32),
           jnp.abs(jax.random.normal(keys[5], (de,), jnp.float32)) + 0.5)
    bn1 = (jnp.ones((de,), jnp.float32), jnp.zeros((de,), jnp.float32),
           0.1 * jax.random.normal(keys[6], (de,), jnp.float32),
           jnp.abs(jax.random.normal(keys[7], (de,), jnp.float32)) + 0.5)

    # One-time weight preprocessing (hoisted off the per-call path).
    params = prepare_tucker_params(W, all_ent, bn0, bn1)

    out = tucker_forward(e1, rel, params)
    jax.block_until_ready(out)

    ref = tucker_reference(e1, rel, all_ent, W, bn0, bn1)
    assert out.shape == (B, N)

    # Tolerance documents the deliberate bf16 entity/y streams in the scoring
    # matmul (f32 accumulation): compare at 2% of the output scale, which
    # gives >3x margin over the expected bf16 rounding error at these shapes.
    max_err = float(jnp.max(jnp.abs(out - ref)))
    scale = float(jnp.max(jnp.abs(ref)))
    assert max_err <= 2e-2 * scale + 1e-3, (
        f"max abs err = {max_err}, output scale = {scale}")

    print("KERNEL_OK")
</pallas_src>

<mosaic_0001>
module attributes {stable_mosaic.version = 11 : i64} {
  func.func @tucker_y_kernel(%arg0: i32, %arg1: memref<8x128xf32, #tpu.memory_space<vmem>>, %arg2: memref<1x8x1xf32, #tpu.memory_space<vmem>>, %arg3: memref<1x128xf32, #tpu.memory_space<vmem>>, %arg4: memref<1x128xf32, #tpu.memory_space<vmem>>, %arg5: memref<1x128xf32, #tpu.memory_space<vmem>>, %arg6: memref<1x128xf32, #tpu.memory_space<vmem>>, %arg7: memref<1x128x128xf32, #tpu.memory_space<vmem>>, %arg8: memref<8x128xbf16, #tpu.memory_space<vmem>>, %arg9: memref<8x128xf32, #tpu.memory_space<vmem>>) attributes {dimension_semantics = [#tpu.dimension_semantics<arbitrary>], iteration_bounds = array<i64: 16>, scalar_prefetch = 0 : i64, scratch_operands = 1 : i64, tpu.core_type = #tpu.core_type<tc>, window_params = [{pipeline_mode = #tpu.pipeline_mode<synchronous>, transform_indices = @transform_0, window_bounds = array<i64: 8, 128>}, {transform_indices = @transform_1, window_bounds = array<i64: 1, 8, 1>}, {pipeline_mode = #tpu.pipeline_mode<synchronous>, transform_indices = @transform_2, window_bounds = array<i64: 1, 128>}, {pipeline_mode = #tpu.pipeline_mode<synchronous>, transform_indices = @transform_3, window_bounds = array<i64: 1, 128>}, {pipeline_mode = #tpu.pipeline_mode<synchronous>, transform_indices = @transform_4, window_bounds = array<i64: 1, 128>}, {pipeline_mode = #tpu.pipeline_mode<synchronous>, transform_indices = @transform_5, window_bounds = array<i64: 1, 128>}, {transform_indices = @transform_6, window_bounds = array<i64: 1, 128, 128>}, {pipeline_mode = #tpu.pipeline_mode<synchronous>, transform_indices = @transform_7, window_bounds = array<i64: 8, 128>}]} {
    %c0_i32 = arith.constant 0 : i32
    %0 = arith.cmpi eq, %arg0, %c0_i32 : i32
    %1 = arith.extui %0 : i1 to i32
    %c0_i32_0 = arith.constant 0 : i32
    %2 = arith.cmpi ne, %1, %c0_i32_0 : i32
    scf.if %2 {
      %cst_17 = arith.constant 0.000000e+00 : f32
      %23 = vector.broadcast %cst_17 : f32 to vector<8x128xf32>
      %c0_18 = arith.constant 0 : index
      %c0_19 = arith.constant 0 : index
      %24 = vector.load %arg9[%c0_18, %c0_19] : memref<8x128xf32, #tpu.memory_space<vmem>>, vector<8x128xf32>
      tpu.vector_store %arg9[%c0_18, %c0_19], %23 {strides = array<i32>} : memref<8x128xf32, #tpu.memory_space<vmem>>, vector<8x128xf32>,
    } else {
    }
    %c0 = arith.constant 0 : index
    %c0_1 = arith.constant 0 : index
    %3 = vector.load %arg1[%c0, %c0_1] : memref<8x128xf32, #tpu.memory_space<vmem>>, vector<8x128xf32>
    %c0_2 = arith.constant 0 : index
    %c0_3 = arith.constant 0 : index
    %4 = vector.load %arg3[%c0_2, %c0_3] : memref<1x128xf32, #tpu.memory_space<vmem>>, vector<1x128xf32>
    %5 = vector.broadcast %4 : vector<1x128xf32> to vector<8x128xf32>
    %6 = arith.mulf %3, %5 : vector<8x128xf32>
    %c0_4 = arith.constant 0 : index
    %c0_5 = arith.constant 0 : index
    %7 = vector.load %arg4[%c0_4, %c0_5] : memref<1x128xf32, #tpu.memory_space<vmem>>, vector<1x128xf32>
    %8 = vector.broadcast %7 : vector<1x128xf32> to vector<8x128xf32>
    %9 = arith.addf %6, %8 : vector<8x128xf32>
    %c0_6 = arith.constant 0 : index
    %c0_7 = arith.constant 0 : index
    %c0_8 = arith.constant 0 : index
    %10 = vector.load %arg2[%c0_6, %c0_7, %c0_8] : memref<1x8x1xf32, #tpu.memory_space<vmem>>, vector<1x8x1xf32>
    %11 = vector.shape_cast %10 : vector<1x8x1xf32> to vector<8x1xf32>
    %12 = vector.broadcast %11 : vector<8x1xf32> to vector<8x128xf32>
    %13 = arith.mulf %9, %12 : vector<8x128xf32>
    %c0_9 = arith.constant 0 : index
    %c0_10 = arith.constant 0 : index
    %14 = vector.load %arg9[%c0_9, %c0_10] : memref<8x128xf32, #tpu.memory_space<vmem>>, vector<8x128xf32>
    %c0_11 = arith.constant 0 : index
    %c0_12 = arith.constant 0 : index
    %c0_13 = arith.constant 0 : index
    %15 = vector.load %arg7[%c0_11, %c0_12, %c0_13] : memref<1x128x128xf32, #tpu.memory_space<vmem>>, vector<1x128x128xf32>
    %16 = vector.shape_cast %15 : vector<1x128x128xf32> to vector<128x128xf32>
    %cst = arith.constant dense<0.000000e+00> : vector<8x128xf32>
    %17 = tpu.matmul %13, %16, %cst {dimension_numbers = #tpu.dot_dimension_numbers<[1], [0], [0], [1], [0, 0, 1, 1], [], []>} : vector<8x128xf32>, vector<128x128xf32>, vector<8x128xf32> -> vector<8x128xf32>
    %18 = arith.addf %14, %17 : vector<8x128xf32>
    %c0_14 = arith.constant 0 : index
    %c0_15 = arith.constant 0 : index
    %19 = vector.load %arg9[%c0_14, %c0_15] : memref<8x128xf32, #tpu.memory_space<vmem>>, vector<8x128xf32>
    tpu.vector_store %arg9[%c0_14, %c0_15], %18 {strides = array<i32>} : memref<8x128xf32, #tpu.memory_space<vmem>>, vector<8x128xf32>,
    %c15_i32 = arith.constant 15 : i32
    %20 = arith.cmpi eq, %arg0, %c15_i32 : i32
    %21 = arith.extui %20 : i1 to i32
    %c0_i32_16 = arith.constant 0 : i32
    %22 = arith.cmpi ne, %21, %c0_i32_16 : i32
    scf.if %22 {
      %c0_17 = arith.constant 0 : index
      %c0_18 = arith.constant 0 : index
      %23 = vector.load %arg9[%c0_17, %c0_18] : memref<8x128xf32, #tpu.memory_space<vmem>>, vector<8x128xf32>
      %c0_19 = arith.constant 0 : index
      %c0_20 = arith.constant 0 : index
      %24 = vector.load %arg5[%c0_19, %c0_20] : memref<1x128xf32, #tpu.memory_space<vmem>>, vector<1x128xf32>
      %25 = vector.broadcast %24 : vector<1x128xf32> to vector<8x128xf32>
      %26 = arith.mulf %23, %25 : vector<8x128xf32>
      %c0_21 = arith.constant 0 : index
      %c0_22 = arith.constant 0 : index
      %27 = vector.load %arg6[%c0_21, %c0_22] : memref<1x128xf32, #tpu.memory_space<vmem>>, vector<1x128xf32>
      %28 = vector.broadcast %27 : vector<1x128xf32> to vector<8x128xf32>
      %29 = arith.addf %26, %28 : vector<8x128xf32>
      %30 = arith.truncf %29 : vector<8x128xf32> to vector<8x128xbf16>
      %c0_23 = arith.constant 0 : index
      %c0_24 = arith.constant 0 : index
      %31 = vector.load %arg8[%c0_23, %c0_24] : memref<8x128xbf16, #tpu.memory_space<vmem>>, vector<8x128xbf16>
      tpu.vector_store %arg8[%c0_23, %c0_24], %30 {strides = array<i32>} : memref<8x128xbf16, #tpu.memory_space<vmem>>, vector<8x128xbf16>,
    } else {
    }
    return
  }
  func.func @transform_0(%arg0: i32) -> (i32, i32) {
    %c0_i32 = arith.constant 0 : i32
    %c0_i32_0 = arith.constant 0 : i32
    %c0_i32_1 = arith.constant 0 : i32
    return %c0_i32, %c0_i32_0 : i32, i32
  }
  func.func @transform_1(%arg0: i32) -> (i32, i32, i32) {
    %c0_i32 = arith.constant 0 : i32
    %c0_i32_0 = arith.constant 0 : i32
    %c0_i32_1 = arith.constant 0 : i32
    return %arg0, %c0_i32, %c0_i32_0 : i32, i32, i32
  }
  func.func @transform_2(%arg0: i32) -> (i32, i32) {
    %c0_i32 = arith.constant 0 : i32
    %c0_i32_0 = arith.constant 0 : i32
    %c0_i32_1 = arith.constant 0 : i32
    return %c0_i32, %c0_i32_0 : i32, i32
  }
  func.func @transform_3(%arg0: i32) -> (i32, i32) {
    %c0_i32 = arith.constant 0 : i32
    %c0_i32_0 = arith.constant 0 : i32
    %c0_i32_1 = arith.constant 0 : i32
    return %c0_i32, %c0_i32_0 : i32, i32
  }
  func.func @transform_4(%arg0: i32) -> (i32, i32) {
    %c0_i32 = arith.constant 0 : i32
    %c0_i32_0 = arith.constant 0 : i32
    %c0_i32_1 = arith.constant 0 : i32
    return %c0_i32, %c0_i32_0 : i32, i32
  }
  func.func @transform_5(%arg0: i32) -> (i32, i32) {
    %c0_i32 = arith.constant 0 : i32
    %c0_i32_0 = arith.constant 0 : i32
    %c0_i32_1 = arith.constant 0 : i32
    return %c0_i32, %c0_i32_0 : i32, i32
  }
  func.func @transform_6(%arg0: i32) -> (i32, i32, i32) {
    %c0_i32 = arith.constant 0 : i32
    %c0_i32_0 = arith.constant 0 : i32
    %c0_i32_1 = arith.constant 0 : i32
    return %arg0, %c0_i32, %c0_i32_0 : i32, i32, i32
  }
  func.func @transform_7(%arg0: i32) -> (i32, i32) {
    %c0_i32 = arith.constant 0 : i32
    %c0_i32_0 = arith.constant 0 : i32
    %c0_i32_1 = arith.constant 0 : i32
    return %c0_i32, %c0_i32_0 : i32, i32
  }
}

</mosaic_0001>

<llo_original>
// kernel: tpu_custom_call.1
$region0: #{tpu_custom_call.1}
  #allocation0 [shape = 'u32[]', space=smem, size = 0x4, offset = 0x4, fixed_abs, tag = 'smem constant byte address 0x4 - core index']
  #allocation1 [shape = 'u32[144,128]{1,0:T(1,128)}', space=vmem, size = 0x12000, scoped, tag = 'internal scratch']
  #allocation2 [shape = 'f32[8,128]{1,0:T(8,128)}', space=vmem, size = 0x1000, scoped, tag = 'scratch operand']
  %s0 = inlined_call_operand.vmem [shape: f32[8,128], index: 0, kind: input, shape index: {}]
  %s1 = inlined_call_operand.vmem [shape: f32[16,8,1], index: 1, kind: input, shape index: {}]
  %s2 = inlined_call_operand.vmem [shape: f32[1,128], index: 2, kind: input, shape index: {}]
  %s3 = inlined_call_operand.vmem [shape: f32[1,128], index: 3, kind: input, shape index: {}]
  %s4 = inlined_call_operand.vmem [shape: f32[1,128], index: 4, kind: input, shape index: {}]
  %s5 = inlined_call_operand.vmem [shape: f32[1,128], index: 5, kind: input, shape index: {}]
  %s6 = inlined_call_operand.hbm [shape: f32[16,128,128], index: 6, kind: input, shape index: {}]
  %s7 = inlined_call_operand.hbm [shape: bf16[8,128], index: 7, kind: output, shape index: {}]
  %s8 = sld [smem:[#allocation0]]
  $region73: #{tpu_custom_call.1} parent=0
    _
  %s10 = ssub.s32 1, %s8
  %s11 = scalar_select 0, %s10, %s8
  $region1: #{tpu_custom_call.1} parent=0
    #allocation3 [shape = 'u8[131072]{0}', space=vmem, size = 0x20000, scoped, tag = 'input window, operand 6']
    #allocation4 [shape = 's32[2]{0}', space=sflag, size = 0x8, scoped, tag = 'scoped memory for tpu_custom_call.1']
    #allocation5 [shape = 's32[2]{0}', space=sflag, size = 0x8, scoped, tag = 'scoped memory for tpu_custom_call.1']
    #allocation6 [shape = 'u8[2048]{0}', space=vmem, size = 0x800, scoped, tag = 'output window, operand 0, single buffered']
    %12 = vsyncpa [#allocation4], 0
    %s13 = scalar_lea.sflag [#allocation4], 1
    %14 = vsyncpa %s13, 0
    %15 = vsyncpa [#allocation5], 0
    loop: start=0, step=1, limit=18
    $region2: #{tpu_custom_call.1} parent=1 // loop_pre_header
      _
    $region3: #{tpu_custom_call.1} parent=1 // loop_header
      %s17 = sphi 0, %s21
      %p18 = scmp.ge.s32.totalorder %s17, 18
      %s25 = sphi 0, %s25
      %s27 = sphi 0, %s25
      %s28 = sphi 0, %s27
      %s42 = sphi 0, %s28
      %s48 = sphi 0, %s50
      %s51 = sphi 0, %s48
      %s52 = sphi 0, %s51
      %s68 = sphi 0, %s52
      %s72 = sphi 0, %s72
      %s74 = sphi 0, %s72
      %s75 = sphi 0, %s74
      %s89 = sphi 0, %s75
      %s93 = sphi 0, %s93
      %s95 = sphi 0, %s93
      %s96 = sphi 0, %s95
      %s110 = sphi 0, %s96
      %s114 = sphi 0, %s114
      %s116 = sphi 0, %s114
      %s117 = sphi 0, %s116
      %s131 = sphi 0, %s117
      %s135 = sphi 0, %s135
      %s137 = sphi 0, %s135
      %s138 = sphi 0, %s137
      %s152 = sphi 0, %s138
      %s158 = sphi 0, %s160
      %s161 = sphi 0, %s158
      %s162 = sphi 0, %s161
      %s178 = sphi 0, %s162
      %s182 = sphi 0, %s182
      %s184 = sphi 0, %s182
      %s185 = sphi 0, %s184
      %s199 = sphi 0, %s185
    $region4: #{tpu_custom_call.1} parent=1 // loop_header_branch
      %20 = sbr.rel (%p18) target = $region8
    $region5: #{tpu_custom_call.1} parent=1 // loop_body
      %s22 = ssub.s32 %s17, 1
      %s23 = ssub.s32 %s17, 2
      %s24 = sadd.s32 %s17, 1
      %s26 = sadd.s32 %s25, 1
      %p29 = scmp.eq.s32.totalorder %s17, 15
      %p30 = scmp.ne.s32.totalorder %s25, %s27
      %p31 = scmp.eq.s32.totalorder %s17, 0
      %p32 = por %p30, %p31
      %p33 = scmp.ne.s32.totalorder %s25, %s27
      %p34 = scmp.eq.s32.totalorder %s22, 15
      %p35 = por %p33, %p34
      %p36 = scmp.ne.s32.totalorder %s27, %s28
      %p37 = scmp.eq.s32.totalorder %s22, 0
      %p38 = por %p36, %p37
      %p39 = scmp.ne.s32.totalorder %s27, %s28
      %p40 = scmp.eq.s32.totalorder %s23, 15
      %p41 = por %p39, %p40
      %p43 = scmp.ne.s32.totalorder %s28, %s42
      %p44 = scmp.eq.s32.totalorder %s23, 0
      %p45 = por %p43, %p44
      %s46 = ssub.s32 %s17, %s24
      %p47 = scmp.eq.s32.totalorder %s46, 0
      %s49 = sadd.s32 %s48, 1
      %s50 = scalar_select %p47, %s48, %s49
      %p53 = pneg %p47
      %p54 = scmp.eq.s32.totalorder %s17, 15
      %p55 = por %p53, %p54
      %p56 = scmp.ne.s32.totalorder %s48, %s51
      %p57 = scmp.eq.s32.totalorder %s17, 0
      %p58 = por %p56, %p57
      %p59 = scmp.ne.s32.totalorder %s48, %s51
      %p60 = scmp.eq.s32.totalorder %s22, 15
      %p61 = por %p59, %p60
      %p62 = scmp.ne.s32.totalorder %s51, %s52
      %p63 = scmp.eq.s32.totalorder %s22, 0
      %p64 = por %p62, %p63
      %p65 = scmp.ne.s32.totalorder %s51, %s52
      %p66 = scmp.eq.s32.totalorder %s23, 15
      %p67 = por %p65, %p66
      %p69 = scmp.ne.s32.totalorder %s52, %s68
      %p70 = scmp.eq.s32.totalorder %s23, 0
      %p71 = por %p69, %p70
      %s73 = sadd.s32 %s72, 1
      %p76 = scmp.eq.s32.totalorder %s17, 15
      %p77 = scmp.ne.s32.totalorder %s72, %s74
      %p78 = scmp.eq.s32.totalorder %s17, 0
      %p79 = por %p77, %p78
      %p80 = scmp.ne.s32.totalorder %s72, %s74
      %p81 = scmp.eq.s32.totalorder %s22, 15
      %p82 = por %p80, %p81
      %p83 = scmp.ne.s32.totalorder %s74, %s75
      %p84 = scmp.eq.s32.totalorder %s22, 0
      %p85 = por %p83, %p84
      %p86 = scmp.ne.s32.totalorder %s74, %s75
      %p87 = scmp.eq.s32.totalorder %s23, 15
      %p88 = por %p86, %p87
      %p90 = scmp.ne.s32.totalorder %s75, %s89
      %p91 = scmp.eq.s32.totalorder %s23, 0
      %p92 = por %p90, %p91
      %s94 = sadd.s32 %s93, 1
      %p97 = scmp.eq.s32.totalorder %s17, 15
      %p98 = scmp.ne.s32.totalorder %s93, %s95
      %p99 = scmp.eq.s32.totalorder %s17, 0
      %p100 = por %p98, %p99
      %p101 = scmp.ne.s32.totalorder %s93, %s95
      %p102 = scmp.eq.s32.totalorder %s22, 15
      %p103 = por %p101, %p102
      %p104 = scmp.ne.s32.totalorder %s95, %s96
      %p105 = scmp.eq.s32.totalorder %s22, 0
      %p106 = por %p104, %p105
      %p107 = scmp.ne.s32.totalorder %s95, %s96
      %p108 = scmp.eq.s32.totalorder %s23, 15
      %p109 = por %p107, %p108
      %p111 = scmp.ne.s32.totalorder %s96, %s110
      %p112 = scmp.eq.s32.totalorder %s23, 0
      %p113 = por %p111, %p112
      %s115 = sadd.s32 %s114, 1
      %p118 = scmp.eq.s32.totalorder %s17, 15
      %p119 = scmp.ne.s32.totalorder %s114, %s116
      %p120 = scmp.eq.s32.totalorder %s17, 0
      %p121 = por %p119, %p120
      %p122 = scmp.ne.s32.totalorder %s114, %s116
      %p123 = scmp.eq.s32.totalorder %s22, 15
      %p124 = por %p122, %p123
      %p125 = scmp.ne.s32.totalorder %s116, %s117
      %p126 = scmp.eq.s32.totalorder %s22, 0
      %p127 = por %p125, %p126
      %p128 = scmp.ne.s32.totalorder %s116, %s117
      %p129 = scmp.eq.s32.totalorder %s23, 15
      %p130 = por %p128, %p129
      %p132 = scmp.ne.s32.totalorder %s117, %s131
      %p133 = scmp.eq.s32.totalorder %s23, 0
      %p134 = por %p132, %p133
      %s136 = sadd.s32 %s135, 1
      %p139 = scmp.eq.s32.totalorder %s17, 15
      %p140 = scmp.ne.s32.totalorder %s135, %s137
      %p141 = scmp.eq.s32.totalorder %s17, 0
      %p142 = por %p140, %p141
      %p143 = scmp.ne.s32.totalorder %s135, %s137
      %p144 = scmp.eq.s32.totalorder %s22, 15
      %p145 = por %p143, %p144
      %p146 = scmp.ne.s32.totalorder %s137, %s138
      %p147 = scmp.eq.s32.totalorder %s22, 0
      %p148 = por %p146, %p147
      %p149 = scmp.ne.s32.totalorder %s137, %s138
      %p150 = scmp.eq.s32.totalorder %s23, 15
      %p151 = por %p149, %p150
      %p153 = scmp.ne.s32.totalorder %s138, %s152
      %p154 = scmp.eq.s32.totalorder %s23, 0
      %p155 = por %p153, %p154
      %s156 = ssub.s32 %s17, %s24
      %p157 = scmp.eq.s32.totalorder %s156, 0
      %s159 = sadd.s32 %s158, 1
      %s160 = scalar_select %p157, %s158, %s159
      %p163 = pneg %p157
      %p164 = scmp.eq.s32.totalorder %s17, 15
      %p165 = por %p163, %p164
      %p166 = scmp.ne.s32.totalorder %s158, %s161
      %p167 = scmp.eq.s32.totalorder %s17, 0
      %p168 = por %p166, %p167
      %p169 = scmp.ne.s32.totalorder %s158, %s161
      %p170 = scmp.eq.s32.totalorder %s22, 15
      %p171 = por %p169, %p170
      %p172 = scmp.ne.s32.totalorder %s161, %s162
      %p173 = scmp.eq.s32.totalorder %s22, 0
      %p174 = por %p172, %p173
      %p175 = scmp.ne.s32.totalorder %s161, %s162
      %p176 = scmp.eq.s32.totalorder %s23, 15
      %p177 = por %p175, %p176
      %p179 = scmp.ne.s32.totalorder %s162, %s178
      %p180 = scmp.eq.s32.totalorder %s23, 0
      %p181 = por %p179, %p180
      %s183 = sadd.s32 %s182, 1
      %p186 = scmp.eq.s32.totalorder %s17, 15
      %p187 = scmp.ne.s32.totalorder %s182, %s184
      %p188 = scmp.eq.s32.totalorder %s17, 0
      %p189 = por %p187, %p188
      %p190 = scmp.ne.s32.totalorder %s182, %s184
      %p191 = scmp.eq.s32.totalorder %s22, 15
      %p192 = por %p190, %p191
      %p193 = scmp.ne.s32.totalorder %s184, %s185
      %p194 = scmp.eq.s32.totalorder %s22, 0
      %p195 = por %p193, %p194
      %p196 = scmp.ne.s32.totalorder %s184, %s185
      %p197 = scmp.eq.s32.totalorder %s23, 15
      %p198 = por %p196, %p197
      %p200 = scmp.ne.s32.totalorder %s185, %s199
      %p201 = scmp.eq.s32.totalorder %s23, 0
      %p202 = por %p200, %p201
      %p203 = scmp.le.s32.totalorder 1, %s17
      %p204 = scmp.lt.s32.totalorder %s17, 17
      %p205 = pnand %p203, %p204
      %p206 = pneg %p205
      // Predicated region
      $region9: #{tpu_custom_call.1} parent=5 // pred_check
        _
      $region10: #{tpu_custom_call.1} parent=5 // pred_check_branch
        %208 = sbr.rel (%p205) target = $region12
      $region11: #{tpu_custom_call.1} parent=5 // pred_region
        %s209 = ssub.s32 %s17, 1
        // Predicated region
        $region13: #{tpu_custom_call.1} parent=11 // pred_check
          %p210 = pneg %p38
        $region14: #{tpu_custom_call.1} parent=11 // pred_check_branch
          %212 = sbr.rel (%p210) target = $region16
        $region15: #{tpu_custom_call.1} parent=11 // pred_region
          _
        $region16: #{tpu_custom_call.1} parent=11 // pred_fallthru
          _
        // Predicated region
        $region17: #{tpu_custom_call.1} parent=11 // pred_check
          %p213 = pneg %p85
        $region18: #{tpu_custom_call.1} parent=11 // pred_check_branch
          %215 = sbr.rel (%p213) target = $region20
        $region19: #{tpu_custom_call.1} parent=11 // pred_region
          _
        $region20: #{tpu_custom_call.1} parent=11 // pred_fallthru
          _
        // Predicated region
        $region21: #{tpu_custom_call.1} parent=11 // pred_check
          %p216 = pneg %p106
        $region22: #{tpu_custom_call.1} parent=11 // pred_check_branch
          %218 = sbr.rel (%p216) target = $region24
        $region23: #{tpu_custom_call.1} parent=11 // pred_region
          _
        $region24: #{tpu_custom_call.1} parent=11 // pred_fallthru
          _
        // Predicated region
        $region25: #{tpu_custom_call.1} parent=11 // pred_check
          %p219 = pneg %p127
        $region26: #{tpu_custom_call.1} parent=11 // pred_check_branch
          %221 = sbr.rel (%p219) target = $region28
        $region27: #{tpu_custom_call.1} parent=11 // pred_region
          _
        $region28: #{tpu_custom_call.1} parent=11 // pred_fallthru
          _
        // Predicated region
        $region29: #{tpu_custom_call.1} parent=11 // pred_check
          %p222 = pneg %p148
        $region30: #{tpu_custom_call.1} parent=11 // pred_check_branch
          %224 = sbr.rel (%p222) target = $region32
        $region31: #{tpu_custom_call.1} parent=11 // pred_region
          _
        $region32: #{tpu_custom_call.1} parent=11 // pred_fallthru
          _
      $region12: #{tpu_custom_call.1} parent=5 // pred_fallthru
        _
      %p225 = scmp.lt.s32.totalorder %s17, 16
      // Predicated region
      $region33: #{tpu_custom_call.1} parent=5 // pred_check
        %p226 = pneg %p225
      $region34: #{tpu_custom_call.1} parent=5 // pred_check_branch
        %228 = sbr.rel (%p226) target = $region36
      $region35: #{tpu_custom_call.1} parent=5 // pred_region
        // Predicated region
        $region37: #{tpu_custom_call.1} parent=35 // pred_check
          %p229 = pneg %p58
        $region38: #{tpu_custom_call.1} parent=35 // pred_check_branch
          %231 = sbr.rel (%p229) target = $region40
        $region39: #{tpu_custom_call.1} parent=35 // pred_region
          %p232 = scmp.lt.s32.totalorder %s17, 15
          %s233 = scalar_select %p232, %s17, 15
          %s234 = smul.addr %s233, 8
          %s235 = scalar_lea.vmem %s1, %s234
        $region40: #{tpu_custom_call.1} parent=35 // pred_fallthru
          _
        // Predicated region
        $region41: #{tpu_custom_call.1} parent=35 // pred_check
          %p236 = pneg %p168
        $region42: #{tpu_custom_call.1} parent=35 // pred_check_branch
          %238 = sbr.rel (%p236) target = $region44
        $region43: #{tpu_custom_call.1} parent=35 // pred_region
          %s239 = sand.u32 %s158, 1
          %s240 = scalar_lea.sflag [#allocation4], %s239
          %s241 = sand.u32 %s158, 1
          %s242 = smul.addr %s241, 128
          %s243 = scalar_lea.vmem [#allocation3], %s242
          %s245 = ssub.s32 2048, 2048
          %246 = vsyncadd %s240, %s245
          %s247 = smul.addr %s17, 16
          %s248 = smul.addr %s247, 128
          %s249 = scalar_lea.hbm %s6, %s248
          %s250 = sshll.u32 %s243, 4
          %s251 = int_to_ptr.vmem [resolvable:$true] %s250
          %256 = dma.hbm_to_vmem [thread:$0]  %s249, 2048, %s251, %s240, 128, 128, 8
        $region44: #{tpu_custom_call.1} parent=35 // pred_fallthru
          _
      $region36: #{tpu_custom_call.1} parent=5 // pred_fallthru
        _
      %p257 = scmp.le.s32.totalorder 1, %s17
      %p258 = scmp.lt.s32.totalorder %s17, 17
      %p259 = pnand %p257, %p258
      %p260 = pneg %p259
      // Predicated region
      $region45: #{tpu_custom_call.1} parent=5 // pred_check
        _
      $region46: #{tpu_custom_call.1} parent=5 // pred_check_branch
        %262 = sbr.rel (%p259) target = $region48
      $region47: #{tpu_custom_call.1} parent=5 // pred_region
        %s263 = ssub.s32 %s17, 1
        %s264 = sand.u32 %s161, 1
        %s265 = scalar_lea.sflag [#allocation4], %s264
        %s266 = sand.u32 %s161, 1
        %s267 = smul.addr %s266, 128
        %s268 = scalar_lea.vmem [#allocation3], %s267
        // Predicated region
        $region49: #{tpu_custom_call.1} parent=47 // pred_check
          %p269 = pneg %p174
        $region50: #{tpu_custom_call.1} parent=47 // pred_check_branch
          %271 = sbr.rel (%p269) target = $region52
        $region51: #{tpu_custom_call.1} parent=47 // pred_region
          %272 = dma.done %s265, 2048
        $region52: #{tpu_custom_call.1} parent=47 // pred_fallthru
          _
        %p273 = pneg %p38
        %p274 = pneg %p35
        %p275 = scmp.lt.s32.totalorder %s22, 15
        %s276 = scalar_select %p275, %s22, 15
        %s277 = smul.addr %s276, 8
        %s278 = scalar_lea.vmem %s1, %s277
        %p279 = pneg %p64
        %p280 = pneg %p61
        %p281 = pneg %p85
        %p282 = pneg %p82
        %p283 = pneg %p106
        %p284 = pneg %p103
        %p285 = pneg %p127
        %p286 = pneg %p124
        %p287 = pneg %p148
        %p288 = pneg %p145
        %s289 = sand.u32 %s161, 1
        %s290 = scalar_lea.sflag [#allocation4], %s289
        %s291 = sand.u32 %s161, 1
        %s292 = smul.addr %s291, 128
        %s293 = scalar_lea.vmem [#allocation3], %s292
        %p294 = pneg %p174
        %p295 = pneg %p171
        %p296 = pneg %p195
        %p297 = pneg %p192
        %p298 = scmp.lt.s32.totalorder %s22, 15
        %s299 = scalar_select %p298, %s22, 15
        %s300 = smul.addr %s299, 8
        %s301 = scalar_lea.vmem %s1, %s300
        %p302 = scmp.eq.s32.totalorder %s22, 0
        // Predicated region
        $region53: #{tpu_custom_call.1} parent=47 // pred_check
          %p303 = pneg %p302
        $region54: #{tpu_custom_call.1} parent=47 // pred_check_branch
          %305 = sbr.rel (%p303) target = $region56
        $region55: #{tpu_custom_call.1} parent=47 // pred_region
          %306 = vst [vmem:[#allocation2] sm:$0xff] 0.0
        $region56: #{tpu_custom_call.1} parent=47 // pred_fallthru
          _
        %v307 = vld [vmem:[%s0] sm:$0xff]
        %v308 = vld [vmem:[%s2] sm:$0x1]
        %v310 = vlaneseq
        %v311 = vshrl.u32 %v310, 7
        %v312 = vsub.s32 0, %v311
        %v313 = vrot.slane %v308, %v312
        %v315 = vmul.f32 %v307, %v313
        %v316 = vld [vmem:[%s3] sm:$0x1]
        %v318 = vlaneseq
        %v319 = vshrl.u32 %v318, 7
        %v320 = vsub.s32 0, %v319
        %v321 = vrot.slane %v316, %v320
        %v323 = vadd.f32 %v315, %v321
        %v324 = vld [vmem:[%s301] sm:$0xff]
        %326 = vset.pattern.permute.xlu0 0
        %327 = vperm.xlu0 %326, %v324
        %v328 = vpop.permute.xlu0 %327
        %v330 = vmul.f32 %v323, %v328
        %v331 = vld [vmem:[#allocation2] sm:$0xff]
        %v332 = vld [vmem:[%s268] sm:$0xff]
        %v333 = vld [vmem:[%s268 + $0x8] sm:$0xff]
        %v334 = vld [vmem:[%s268 + $0x10] sm:$0xff]
        %v335 = vld [vmem:[%s268 + $0x18] sm:$0xff]
        %v336 = vld [vmem:[%s268 + $0x20] sm:$0xff]
        %v337 = vld [vmem:[%s268 + $0x28] sm:$0xff]
        %v338 = vld [vmem:[%s268 + $0x30] sm:$0xff]
        %v339 = vld [vmem:[%s268 + $0x38] sm:$0xff]
        %v340 = vld [vmem:[%s268 + $0x40] sm:$0xff]
        %v341 = vld [vmem:[%s268 + $0x48] sm:$0xff]
        %v342 = vld [vmem:[%s268 + $0x50] sm:$0xff]
        %v343 = vld [vmem:[%s268 + $0x58] sm:$0xff]
        %v344 = vld [vmem:[%s268 + $0x60] sm:$0xff]
        %v345 = vld [vmem:[%s268 + $0x68] sm:$0xff]
        %v346 = vld [vmem:[%s268 + $0x70] sm:$0xff]
        %v347 = vld [vmem:[%s268 + $0x78] sm:$0xff]
        %348 = vmatprep.subr.mxu0 0.0
        %349 = vmatpush1.msra.mxu0 %v332
        %350 = vmatprep.subr.mxu0 0.0
        %351 = vmatpush1.msra.mxu0 %v333
        %352 = vmatprep.subr.mxu0 0.0
        %353 = vmatpush1.msra.mxu0 %v334
        %354 = vmatprep.subr.mxu0 0.0
        %355 = vmatpush1.msra.mxu0 %v335
        %356 = vmatprep.subr.mxu0 0.0
        %357 = vmatpush1.msra.mxu0 %v336
        %358 = vmatprep.subr.mxu0 0.0
        %359 = vmatpush1.msra.mxu0 %v337
        %360 = vmatprep.subr.mxu0 0.0
        %361 = vmatpush1.msra.mxu0 %v338
        %362 = vmatprep.subr.mxu0 0.0
        %363 = vmatpush1.msra.mxu0 %v339
        %364 = vmatprep.subr.mxu0 0.0
        %365 = vmatpush1.msra.mxu0 %v340
        %366 = vmatprep.subr.mxu0 0.0
        %367 = vmatpush1.msra.mxu0 %v341
        %368 = vmatprep.subr.mxu0 0.0
        %369 = vmatpush1.msra.mxu0 %v342
        %370 = vmatprep.subr.mxu0 0.0
        %371 = vmatpush1.msra.mxu0 %v343
        %372 = vmatprep.subr.mxu0 0.0
        %373 = vmatpush1.msra.mxu0 %v344
        %374 = vmatprep.subr.mxu0 0.0
        %375 = vmatpush1.msra.mxu0 %v345
        %376 = vmatprep.subr.mxu0 0.0
        %377 = vmatpush1.msra.mxu0 %v346
        %378 = vmatprep.subr.mxu0 0.0
        %379 = vmatpush1.msra.mxu0 %v347
        %380 = vmatprep.subr.mxu0 0.0
        %381 = vmatpush1.msra.mxu0 0.0
        %382 = vmatprep.subr.mxu0 0.0
        %383 = vmatpush1.msra.mxu0 0.0
        %384 = vmatprep.subr.mxu0 0.0
        %385 = vmatpush1.msra.mxu0 0.0
        %386 = vmatprep.subr.mxu0 0.0
        %387 = vmatpush1.msra.mxu0 0.0
        %388 = vmatprep.subr.mxu0 0.0
        %389 = vmatpush1.msra.mxu0 0.0
        %390 = vmatprep.subr.mxu0 0.0
        %391 = vmatpush1.msra.mxu0 0.0
        %392 = vmatprep.subr.mxu0 0.0
        %393 = vmatpush1.msra.mxu0 0.0
        %394 = vmatprep.subr.mxu0 0.0
        %395 = vmatpush1.msra.mxu0 0.0
        %396 = vmatprep.subr.mxu0 0.0
        %397 = vmatpush1.msra.mxu0 0.0
        %398 = vmatprep.subr.mxu0 0.0
        %399 = vmatpush1.msra.mxu0 0.0
        %400 = vmatprep.subr.mxu0 0.0
        %401 = vmatpush1.msra.mxu0 0.0
        %402 = vmatprep.subr.mxu0 0.0
        %403 = vmatpush1.msra.mxu0 0.0
        %404 = vmatprep.subr.mxu0 0.0
        %405 = vmatpush1.msra.mxu0 0.0
        %406 = vmatprep.subr.mxu0 0.0
        %407 = vmatpush1.msra.mxu0 0.0
        %408 = vmatprep.subr.mxu0 0.0
        %409 = vmatpush1.msra.mxu0 0.0
        %410 = vmatprep.subr.mxu0 0.0
        %411 = vmatpush1.msra.mxu0 0.0
        %412 = vmatprep.mubr.f32.mxu0 0.0
        %413 = vmatmul.mubr.f32.gmra.mrb[0].mxu0 %v330
        %v414 = vpop.f32.mrb[0].mxu0
        %v415 = vadd.f32 0.0, %v414
        %v416 = vpop.f32.mrb[0].mxu0
        %417 = vdwg.mxu0
        %v418 = vadd.f32 %v331, %v415
        %419 = vst [vmem:[#allocation2] sm:$0xff] %v418
        %p420 = scmp.eq.s32.totalorder %s22, 15
        // Predicated region
        $region57: #{tpu_custom_call.1} parent=47 // pred_check
          %p421 = pneg %p420
        $region58: #{tpu_custom_call.1} parent=47 // pred_check_branch
          %423 = sbr.rel (%p421) target = $region60
        $region59: #{tpu_custom_call.1} parent=47 // pred_region
          %v424 = vld [vmem:[#allocation2] sm:$0xff]
          %v425 = vld [vmem:[%s4] sm:$0x1]
          %v427 = vlaneseq
          %v428 = vshrl.u32 %v427, 7
          %v429 = vsub.s32 0, %v428
          %v430 = vrot.slane %v425, %v429
          %v432 = vmul.f32 %v424, %v430
          %v433 = vld [vmem:[%s5] sm:$0x1]
          %v435 = vlaneseq
          %v436 = vshrl.u32 %v435, 7
          %v437 = vsub.s32 0, %v436
          %v438 = vrot.slane %v433, %v437
          %v440 = vadd.f32 %v432, %v438
          %v441 = vpack.c.bf16 %v440, %v440
          %442 = vst [vmem:[#allocation6] sm:$0xf] %v441
        $region60: #{tpu_custom_call.1} parent=47 // pred_fallthru
          _
        // Predicated region
        $region61: #{tpu_custom_call.1} parent=47 // pred_check
          %p443 = pneg %p192
        $region62: #{tpu_custom_call.1} parent=47 // pred_check_branch
          %445 = sbr.rel (%p443) target = $region64
        $region63: #{tpu_custom_call.1} parent=47 // pred_region
          %s447 = ssub.s32 64, 64
          %448 = vsyncadd [#allocation5], %s447
          %s450 = sshll.u32 [#allocation6], 4
          %s451 = int_to_ptr.vmem [resolvable:$true] %s450
          %453 = dma.vmem_to_hbm [thread:$0]  %s451, 64, %s7, [#allocation5]
        $region64: #{tpu_custom_call.1} parent=47 // pred_fallthru
          _
        // Predicated region
        $region65: #{tpu_custom_call.1} parent=47 // pred_check
          %p454 = pneg %p192
        $region66: #{tpu_custom_call.1} parent=47 // pred_check_branch
          %456 = sbr.rel (%p454) target = $region68
        $region67: #{tpu_custom_call.1} parent=47 // pred_region
          %457 = dma.done [#allocation5], 64
        $region68: #{tpu_custom_call.1} parent=47 // pred_fallthru
          _
      $region48: #{tpu_custom_call.1} parent=5 // pred_fallthru
        _
      %p458 = scmp.le.s32.totalorder 2, %s17
      // Predicated region
      $region69: #{tpu_custom_call.1} parent=5 // pred_check
        %p459 = pneg %p458
      $region70: #{tpu_custom_call.1} parent=5 // pred_check_branch
        %461 = sbr.rel (%p459) target = $region72
      $region71: #{tpu_custom_call.1} parent=5 // pred_region
        %s462 = ssub.s32 %s17, 2
      $region72: #{tpu_custom_call.1} parent=5 // pred_fallthru
        _
    $region6: #{tpu_custom_call.1} parent=1 // loop_footer
      %s21 = sadd.s32 1, %s17
    $region7: #{tpu_custom_call.1} parent=1 // loop_footer_branch
      %16 = sbr.rel target = $region3
    $region8: #{tpu_custom_call.1} parent=1 // loop_exit
      _
    %463 = vsyncpa [#allocation4], 1
    %s464 = scalar_lea.sflag [#allocation4], 1
    %465 = vsyncpa %s464, 1
    %466 = vsyncpa [#allocation5], 1
    %s467 = scalar_lea.sflag [#allocation5], 1
    %468 = vsyncpa %s467, 1

</llo_original>
